<compile_context>
chip_gen: v6e
topology: v6e:2x2x1
jax: 0.10.0
libtpu: 0.0.40
codegen_flags: <defaults>
</compile_context>

<pallas_src>
import math
import functools

import jax
import jax.numpy as jnp
import numpy as np
from jax.experimental import pallas as pl
from jax.experimental.pallas import tpu as pltpu


# ------------------------------------------------------------------ constants
def _fixed_embedding_table_np(size, d_model):
    """Exactly the PyTorch FixedEmbedding weight (sin on even, cos on odd cols)."""
    div = np.exp(np.arange(0, d_model, 2, dtype=np.float32)
                 * np.float32(-(math.log(10000.0) / d_model))).astype(np.float32)
    pos = np.arange(size, dtype=np.float32)[:, None]
    arg = (pos * div).astype(np.float32)
    tbl = np.zeros((size, d_model), np.float32)
    tbl[:, 0::2] = np.sin(arg)
    tbl[:, 1::2] = np.cos(arg)
    return tbl


def _pick_tile_l(L, B, cap=512):
    """L tile: the full L if it fits, else a multiple of 128 (<= cap).

    cap=512 sits on the measured >=85%-of-roofline plateau while bounding the
    per-step live set for v5e (16 MiB default scoped VMEM) and v7x (64 MiB
    physical).  When B == 1 the cap drops to 256 so B * cdiv(L, tl) >= 2 and
    both v7x TensorCores get grid steps."""
    if B == 1:
        cap = min(cap, 256)
    return L if L <= cap else cap


# --------------------------------------------------------------------- kernel
def _data_embedding_kernel(xu_ref, tgt_ref, w_ref, tbl_ref, o_ref, *, n_groups):
    # xu_ref:  (1, tl, 3*c_in)  [x[t-1], x[t], x[t+1]] unfolded on channels
    # tgt_ref: (1, 8, tl)       per-group GLOBAL table-column targets (f32 ints,
    #                           pad rows are -1 and never match)
    # w_ref:   (3*c_in, d_model) fused circular-conv taps (resident)
    # tbl_ref: (s_pad, d_model)  concatenated FixedEmbedding tables (resident)
    # o_ref:   (1, tl, d_model)
    tl = xu_ref.shape[1]
    s_pad = tbl_ref.shape[0]

    # --- value embedding: one MXU matmul with K = 3*c_in --------------------
    value = jnp.dot(xu_ref[0], w_ref[...],
                    preferred_element_type=jnp.float32)            # (tl, d_model)

    # --- temporal embedding: exact lookup as a one-hot MXU matmul -----------
    # (no transcendentals: a handful of VPU compares/selects + one MXU dot)
    tgt = jnp.transpose(tgt_ref[0], (1, 0))                        # (tl, 8) tiny XLU transpose
    col = jax.lax.broadcasted_iota(jnp.int32, (tl, s_pad), 1).astype(jnp.float32)
    match = col == tgt[:, 0:1]
    for g in range(1, n_groups):                                   # static unroll; groups disjoint
        match = jnp.logical_or(match, col == tgt[:, g:g + 1])
    onehot = jnp.where(match, 1.0, 0.0).astype(jnp.float32)        # exact 0/1 selection
    temporal = jnp.dot(onehot, tbl_ref[...],
                       preferred_element_type=jnp.float32)         # (tl, d_model)

    o_ref[0] = (value + temporal).astype(o_ref.dtype)


# -------------------------------------------------------------------- wrapper
@functools.partial(jax.jit, static_argnames=("sizes",))
def data_embedding_wo_pos(x, x_mark, conv_weight, *, sizes):
    """x: (B, L, c_in) f32; x_mark: (B, L, n_marks) f32 in [-0.5, 0.5);
       conv_weight: (d_model, c_in, 3) f32 (PyTorch Conv1d layout);
       sizes: per-feature vocab sizes (None -> feature skipped)."""
    B, L, c_in = x.shape
    d_model = conv_weight.shape[0]
    assert d_model % 2 == 0, "FixedEmbedding requires an even d_model"

    # ----- value-embedding operands ------------------------------------------------
    # Circular Conv1d(k=3, pad=1) as ONE matmul: unfold the +/-1 circular halo into
    # the channel axis (removes halo handling when tiling L).
    x = x.astype(jnp.float32)
    x_unfold = jnp.concatenate(
        [jnp.roll(x, 1, axis=1), x, jnp.roll(x, -1, axis=1)], axis=-1)   # (B, L, 3*c_in)
    # (d_model, c_in, 3) -> (3, c_in, d_model) -> (3*c_in, d_model); row k*c_in + c
    # pairs with x[t + k - 1, c], matching x_unfold's column order.
    w_fused = (jnp.transpose(conv_weight, (2, 1, 0))
               .reshape(3 * c_in, d_model).astype(jnp.float32))

    # ----- temporal-embedding operands ----------------------------------------------
    # Concatenated FixedEmbedding tables (host-built constant, stays resident in VMEM)
    # plus lane-dense global column targets (B, 8, L); pad rows use -1 (never match).
    # Note: like the PyTorch module, indices outside [0, size) are caller error;
    # the one-hot simply contributes zero instead of raising.
    xm = x_mark.astype(jnp.float32) + 0.5
    tables, tgt_rows, offset = [], [], 0
    for i, size in enumerate(sizes):
        if size is None:
            continue
        tables.append(_fixed_embedding_table_np(int(size), d_model))
        tgt_rows.append(jnp.floor(xm[:, :, i] * float(size)) + float(offset))
        offset += int(size)
    if not tgt_rows:                                    # all sizes None: dummy no-op group
        tgt_rows.append(jnp.full((B, L), -1.0, jnp.float32))
    n_groups = len(tgt_rows)
    G = 8                                               # pad group axis to a sublane tile
    tgt_rows += [jnp.full((B, L), -1.0, jnp.float32)] * (G - n_groups)
    tgt = jnp.stack(tgt_rows, axis=1)                   # (B, 8, L) f32, exact small ints

    s_pad = max(128, ((offset + 127) // 128) * 128)     # lane-aligned K for the one-hot dot
    table_np = np.zeros((s_pad, d_model), np.float32)
    if tables:
        table_np[:offset] = np.concatenate(tables, axis=0)
    table = jnp.asarray(table_np)                       # (s_pad, d_model)

    # ----- launch --------------------------------------------------------------------
    tl = _pick_tile_l(L, B)
    grid = (B, pl.cdiv(L, tl))                          # ragged last tile padded/masked
    kernel = functools.partial(_data_embedding_kernel, n_groups=n_groups)

    return pl.pallas_call(
        kernel,
        out_shape=jax.ShapeDtypeStruct((B, L, d_model), jnp.float32),
        grid_spec=pltpu.PrefetchScalarGridSpec(
            num_scalar_prefetch=0,
            grid=grid,
            in_specs=[
                pl.BlockSpec((1, tl, 3 * c_in), lambda b, l: (b, l, 0)),
                pl.BlockSpec((1, G, tl), lambda b, l: (b, 0, l)),
                pl.BlockSpec((3 * c_in, d_model), lambda b, l: (0, 0)),
                pl.BlockSpec((s_pad, d_model), lambda b, l: (0, 0)),
            ],
            out_specs=pl.BlockSpec((1, tl, d_model), lambda b, l: (b, l, 0)),
        ),
        compiler_params=pltpu.CompilerParams(
            dimension_semantics=("parallel", "parallel")),
    )(x_unfold, tgt, w_fused, table)


# ------------------------------------------------------------------ reference
def _reference(x, x_mark, conv_weight, sizes):
    """Pure-JAX reference mirroring the PyTorch module (eval mode)."""
    B, L, _ = x.shape
    d_model = conv_weight.shape[0]
    hp = jax.lax.Precision.HIGHEST
    w = jnp.transpose(conv_weight, (2, 1, 0)).astype(jnp.float32)   # (3, c_in, d_model)
    value = (jnp.einsum("blc,cd->bld", jnp.roll(x, 1, axis=1), w[0], precision=hp)
             + jnp.einsum("blc,cd->bld", x, w[1], precision=hp)
             + jnp.einsum("blc,cd->bld", jnp.roll(x, -1, axis=1), w[2], precision=hp))
    temp = jnp.zeros((B, L, d_model), jnp.float32)
    for i, size in enumerate(sizes):
        if size is None:
            continue
        tbl = jnp.asarray(_fixed_embedding_table_np(int(size), d_model))
        idx = jnp.floor((x_mark[:, :, i] + 0.5) * float(size)).astype(jnp.int32)
        temp = temp + tbl[idx]
    return value + temp


# ----------------------------------------------------------------------- main
if __name__ == "__main__":
    B, L, c_in, d_model = 2, 8, 4, 32
    sizes = (24, 7, 31, 366)  # time_of_day, day_of_week, day_of_month, day_of_year

    key = jax.random.PRNGKey(0)
    kx, km, kw = jax.random.split(key, 3)

    x = jax.random.normal(kx, (B, L, c_in), dtype=jnp.float32)
    # x_mark in [-0.5, 0.5) so ((x + 0.5) * size).long() gives valid table indices
    x_mark = jax.random.uniform(km, (B, L, 4), dtype=jnp.float32,
                                minval=-0.5, maxval=0.4999)

    # Conv1d weight (d_model, c_in, 3), kaiming_normal_(fan_in, leaky_relu)
    fan_in = c_in * 3
    gain = math.sqrt(2.0 / (1.0 + 0.01 ** 2))
    std = gain / math.sqrt(fan_in)
    conv_weight = jax.random.normal(kw, (d_model, c_in, 3), dtype=jnp.float32) * std

    out = data_embedding_wo_pos(x, x_mark, conv_weight, sizes=sizes)
    out = jax.block_until_ready(out)

    ref = _reference(x, x_mark, conv_weight, sizes)
    np.testing.assert_allclose(np.asarray(out), np.asarray(ref),
                               rtol=1e-4, atol=2e-4)
    print("KERNEL_OK")
</pallas_src>

<mosaic_0001>
module attributes {stable_mosaic.version = 11 : i64} {
  func.func @_data_embedding_kernel(%arg0: i32, %arg1: i32, %arg2: memref<1x8x12xf32, #tpu.memory_space<vmem>>, %arg3: memref<1x8x8xf32, #tpu.memory_space<vmem>>, %arg4: memref<12x32xf32, #tpu.memory_space<vmem>>, %arg5: memref<512x32xf32, #tpu.memory_space<vmem>>, %arg6: memref<1x8x32xf32, #tpu.memory_space<vmem>>) attributes {dimension_semantics = [#tpu.dimension_semantics<parallel>, #tpu.dimension_semantics<parallel>], iteration_bounds = array<i64: 2, 1>, scalar_prefetch = 0 : i64, scratch_operands = 0 : i64, tpu.core_type = #tpu.core_type<tc>, window_params = [{transform_indices = @transform_0, window_bounds = array<i64: 1, 8, 12>}, {transform_indices = @transform_1, window_bounds = array<i64: 1, 8, 8>}, {pipeline_mode = #tpu.pipeline_mode<synchronous>, transform_indices = @transform_2, window_bounds = array<i64: 12, 32>}, {pipeline_mode = #tpu.pipeline_mode<synchronous>, transform_indices = @transform_3, window_bounds = array<i64: 512, 32>}, {transform_indices = @transform_4, window_bounds = array<i64: 1, 8, 32>}]} {
    %c0 = arith.constant 0 : index
    %c0_0 = arith.constant 0 : index
    %c0_1 = arith.constant 0 : index
    %0 = vector.load %arg2[%c0, %c0_0, %c0_1] : memref<1x8x12xf32, #tpu.memory_space<vmem>>, vector<1x8x12xf32>
    %1 = vector.shape_cast %0 : vector<1x8x12xf32> to vector<8x12xf32>
    %c0_2 = arith.constant 0 : index
    %c0_3 = arith.constant 0 : index
    %2 = vector.load %arg4[%c0_2, %c0_3] : memref<12x32xf32, #tpu.memory_space<vmem>>, vector<12x32xf32>
    %cst = arith.constant dense<0.000000e+00> : vector<8x32xf32>
    %3 = tpu.matmul %1, %2, %cst {dimension_numbers = #tpu.dot_dimension_numbers<[1], [0], [0], [1], [0, 0, 1, 1], [], []>} : vector<8x12xf32>, vector<12x32xf32>, vector<8x32xf32> -> vector<8x32xf32>
    %c0_4 = arith.constant 0 : index
    %c0_5 = arith.constant 0 : index
    %c0_6 = arith.constant 0 : index
    %4 = vector.load %arg3[%c0_4, %c0_5, %c0_6] : memref<1x8x8xf32, #tpu.memory_space<vmem>>, vector<1x8x8xf32>
    %5 = vector.shape_cast %4 : vector<1x8x8xf32> to vector<8x8xf32>
    %6 = tpu.transpose %5, [1, 0] : vector<8x8xf32> -> vector<8x8xf32>
    %7 = tpu.iota {dimensions = array<i32: 1>} : vector<8x512xi32>
    %8 = arith.sitofp %7 : vector<8x512xi32> to vector<8x512xf32>
    %9 = vector.extract_strided_slice %6 {offsets = [0, 0], sizes = [8, 1], strides = [1, 1]} : vector<8x8xf32> to vector<8x1xf32>
    %10 = vector.broadcast %9 : vector<8x1xf32> to vector<8x512xf32>
    %11 = arith.cmpf oeq, %8, %10 : vector<8x512xf32>
    %12 = vector.extract_strided_slice %6 {offsets = [0, 1], sizes = [8, 1], strides = [1, 1]} : vector<8x8xf32> to vector<8x1xf32>
    %13 = vector.broadcast %12 : vector<8x1xf32> to vector<8x512xf32>
    %14 = arith.cmpf oeq, %8, %13 : vector<8x512xf32>
    %15 = arith.ori %11, %14 : vector<8x512xi1>
    %16 = vector.extract_strided_slice %6 {offsets = [0, 2], sizes = [8, 1], strides = [1, 1]} : vector<8x8xf32> to vector<8x1xf32>
    %17 = vector.broadcast %16 : vector<8x1xf32> to vector<8x512xf32>
    %18 = arith.cmpf oeq, %8, %17 : vector<8x512xf32>
    %19 = arith.ori %15, %18 : vector<8x512xi1>
    %20 = vector.extract_strided_slice %6 {offsets = [0, 3], sizes = [8, 1], strides = [1, 1]} : vector<8x8xf32> to vector<8x1xf32>
    %21 = vector.broadcast %20 : vector<8x1xf32> to vector<8x512xf32>
    %22 = arith.cmpf oeq, %8, %21 : vector<8x512xf32>
    %23 = arith.ori %19, %22 : vector<8x512xi1>
    %cst_7 = arith.constant 1.000000e+00 : f32
    %cst_8 = arith.constant 0.000000e+00 : f32
    %24 = vector.broadcast %cst_7 : f32 to vector<8x512xf32>
    %25 = vector.broadcast %cst_8 : f32 to vector<8x512xf32>
    %26 = arith.select %23, %24, %25 : vector<8x512xi1>, vector<8x512xf32>
    %c0_9 = arith.constant 0 : index
    %c0_10 = arith.constant 0 : index
    %27 = vector.load %arg5[%c0_9, %c0_10] : memref<512x32xf32, #tpu.memory_space<vmem>>, vector<512x32xf32>
    %cst_11 = arith.constant dense<0.000000e+00> : vector<8x32xf32>
    %28 = tpu.matmul %26, %27, %cst_11 {dimension_numbers = #tpu.dot_dimension_numbers<[1], [0], [0], [1], [0, 0, 1, 1], [], []>} : vector<8x512xf32>, vector<512x32xf32>, vector<8x32xf32> -> vector<8x32xf32>
    %29 = arith.addf %3, %28 : vector<8x32xf32>
    %c0_12 = arith.constant 0 : index
    %c0_13 = arith.constant 0 : index
    %c0_14 = arith.constant 0 : index
    %30 = vector.load %arg6[%c0_12, %c0_13, %c0_14] : memref<1x8x32xf32, #tpu.memory_space<vmem>>, vector<1x8x32xf32>
    %31 = vector.shape_cast %30 : vector<1x8x32xf32> to vector<8x32xf32>
    %32 = vector.shape_cast %29 : vector<8x32xf32> to vector<1x8x32xf32>
    tpu.vector_store %arg6[%c0_12, %c0_13, %c0_14], %32 {strides = array<i32>} : memref<1x8x32xf32, #tpu.memory_space<vmem>>, vector<1x8x32xf32>,
    return
  }
  func.func @transform_0(%arg0: i32, %arg1: i32) -> (i32, i32, i32) {
    %c0_i32 = arith.constant 0 : i32
    %c0_i32_0 = arith.constant 0 : i32
    return %arg0, %arg1, %c0_i32 : i32, i32, i32
  }
  func.func @transform_1(%arg0: i32, %arg1: i32) -> (i32, i32, i32) {
    %c0_i32 = arith.constant 0 : i32
    %c0_i32_0 = arith.constant 0 : i32
    return %arg0, %c0_i32, %arg1 : i32, i32, i32
  }
  func.func @transform_2(%arg0: i32, %arg1: i32) -> (i32, i32) {
    %c0_i32 = arith.constant 0 : i32
    %c0_i32_0 = arith.constant 0 : i32
    %c0_i32_1 = arith.constant 0 : i32
    return %c0_i32, %c0_i32_0 : i32, i32
  }
  func.func @transform_3(%arg0: i32, %arg1: i32) -> (i32, i32) {
    %c0_i32 = arith.constant 0 : i32
    %c0_i32_0 = arith.constant 0 : i32
    %c0_i32_1 = arith.constant 0 : i32
    return %c0_i32, %c0_i32_0 : i32, i32
  }
  func.func @transform_4(%arg0: i32, %arg1: i32) -> (i32, i32, i32) {
    %c0_i32 = arith.constant 0 : i32
    %c0_i32_0 = arith.constant 0 : i32
    return %arg0, %arg1, %c0_i32 : i32, i32, i32
  }
}

</mosaic_0001>

<llo_original>
// kernel: data_embedding_wo_pos.1
$region0: #{data_embedding_wo_pos.1}
  #allocation0 [shape = 'u32[]', space=smem, size = 0x4, offset = 0x4, fixed_abs, tag = 'smem constant byte address 0x4 - core index']
  #allocation1 [shape = 'u32[144,128]{1,0:T(1,128)}', space=vmem, size = 0x12000, scoped, tag = 'internal scratch']
  %s0 = inlined_call_operand.vmem [shape: f32[2,8,12], index: 0, kind: input, shape index: {}]
  %s1 = inlined_call_operand.vmem [shape: f32[2,8,8], index: 1, kind: input, shape index: {}]
  %s2 = inlined_call_operand.vmem [shape: f32[12,32], index: 2, kind: input, shape index: {}]
  %s3 = inlined_call_operand.hbm [shape: f32[512,32], index: 3, kind: input, shape index: {}]
  %s4 = inlined_call_operand.hbm [shape: f32[2,8,32], index: 4, kind: output, shape index: {}]
  %s5 = sld [smem:[#allocation0]]
  $region53: #{data_embedding_wo_pos.1} parent=0
    _
  %s7 = ssub.s32 1, %s5
  %s8 = scalar_select 0, %s7, %s5
  $region1: #{data_embedding_wo_pos.1} parent=0
    #allocation2 [shape = 'u8[262144]{0}', space=vmem, size = 0x40000, scoped, tag = 'input window, operand 3, single buffered']
    #allocation3 [shape = 's32[2]{0}', space=sflag, size = 0x8, scoped, tag = 'scoped memory for data_embedding_wo_pos.1']
    #allocation4 [shape = 's32[2]{0}', space=sflag, size = 0x8, scoped, tag = 'scoped memory for data_embedding_wo_pos.1']
    #allocation5 [shape = 'u8[8192]{0}', space=vmem, size = 0x2000, scoped, tag = 'output window, operand 0']
    %9 = vsyncpa [#allocation3], 0
    %10 = vsyncpa [#allocation4], 0
    %s11 = scalar_lea.sflag [#allocation4], 1
    %12 = vsyncpa %s11, 0
    loop: start=0, step=1, limit=4
    $region2: #{data_embedding_wo_pos.1} parent=1 // loop_pre_header
      _
    $region3: #{data_embedding_wo_pos.1} parent=1 // loop_header
      %s14 = sphi 0, %s18
      %p15 = scmp.ge.s32.totalorder %s14, 4
      %s21 = sphi 0, %s33
      %s22 = sphi 0, %s29
      %s23 = sphi 0, %s21
      %s24 = sphi 0, %s22
      %s25 = sphi 0, %s23
      %s26 = sphi 0, %s24
      %s38 = sphi 0, %s40
      %s41 = sphi 0, %s38
      %s42 = sphi 0, %s41
      %s58 = sphi 0, %s42
      %s66 = sphi 0, %s68
      %s69 = sphi 0, %s66
      %s70 = sphi 0, %s69
      %s86 = sphi 0, %s70
      %s90 = sphi 0, %s90
      %s92 = sphi 0, %s90
      %s93 = sphi 0, %s92
      %s107 = sphi 0, %s93
      %s111 = sphi 0, %s111
      %s113 = sphi 0, %s111
      %s114 = sphi 0, %s113
      %s128 = sphi 0, %s114
      %s136 = sphi 0, %s138
      %s139 = sphi 0, %s136
      %s140 = sphi 0, %s139
      %s156 = sphi 0, %s140
    $region4: #{data_embedding_wo_pos.1} parent=1 // loop_header_branch
      %17 = sbr.rel (%p15) target = $region8
    $region5: #{data_embedding_wo_pos.1} parent=1 // loop_body
      %s19 = ssub.s32 %s14, 1
      %s20 = ssub.s32 %s14, 2
      %s27 = sadd.s32 1, %s22
      %p28 = scmp.ge.s32.totalorder %s27, 1
      %s29 = scalar_select %p28, 0, %s27
      %s30 = sadd.s32 1, %s21
      %s31 = scalar_select %p28, %s30, %s21
      %p32 = scmp.ge.s32.totalorder %s31, 2
      %s33 = scalar_select %p32, 0, %s31
      %s34 = ssub.s32 %s21, %s33
      %s35 = ssub.s32 %s22, %s29
      %s36 = sor.u32 %s34, %s35
      %p37 = scmp.eq.s32.totalorder %s36, 0
      %s39 = sadd.s32 %s38, 1
      %s40 = scalar_select %p37, %s38, %s39
      %p43 = pneg %p37
      %p44 = scmp.eq.s32.totalorder %s14, 1
      %p45 = por %p43, %p44
      %p46 = scmp.ne.s32.totalorder %s38, %s41
      %p47 = scmp.eq.s32.totalorder %s14, 0
      %p48 = por %p46, %p47
      %p49 = scmp.ne.s32.totalorder %s38, %s41
      %p50 = scmp.eq.s32.totalorder %s19, 1
      %p51 = por %p49, %p50
      %p52 = scmp.ne.s32.totalorder %s41, %s42
      %p53 = scmp.eq.s32.totalorder %s19, 0
      %p54 = por %p52, %p53
      %p55 = scmp.ne.s32.totalorder %s41, %s42
      %p56 = scmp.eq.s32.totalorder %s20, 1
      %p57 = por %p55, %p56
      %p59 = scmp.ne.s32.totalorder %s42, %s58
      %p60 = scmp.eq.s32.totalorder %s20, 0
      %p61 = por %p59, %p60
      %s62 = ssub.s32 %s21, %s33
      %s63 = ssub.s32 %s22, %s29
      %s64 = sor.u32 %s62, %s63
      %p65 = scmp.eq.s32.totalorder %s64, 0
      %s67 = sadd.s32 %s66, 1
      %s68 = scalar_select %p65, %s66, %s67
      %p71 = pneg %p65
      %p72 = scmp.eq.s32.totalorder %s14, 1
      %p73 = por %p71, %p72
      %p74 = scmp.ne.s32.totalorder %s66, %s69
      %p75 = scmp.eq.s32.totalorder %s14, 0
      %p76 = por %p74, %p75
      %p77 = scmp.ne.s32.totalorder %s66, %s69
      %p78 = scmp.eq.s32.totalorder %s19, 1
      %p79 = por %p77, %p78
      %p80 = scmp.ne.s32.totalorder %s69, %s70
      %p81 = scmp.eq.s32.totalorder %s19, 0
      %p82 = por %p80, %p81
      %p83 = scmp.ne.s32.totalorder %s69, %s70
      %p84 = scmp.eq.s32.totalorder %s20, 1
      %p85 = por %p83, %p84
      %p87 = scmp.ne.s32.totalorder %s70, %s86
      %p88 = scmp.eq.s32.totalorder %s20, 0
      %p89 = por %p87, %p88
      %s91 = sadd.s32 %s90, 1
      %p94 = scmp.eq.s32.totalorder %s14, 1
      %p95 = scmp.ne.s32.totalorder %s90, %s92
      %p96 = scmp.eq.s32.totalorder %s14, 0
      %p97 = por %p95, %p96
      %p98 = scmp.ne.s32.totalorder %s90, %s92
      %p99 = scmp.eq.s32.totalorder %s19, 1
      %p100 = por %p98, %p99
      %p101 = scmp.ne.s32.totalorder %s92, %s93
      %p102 = scmp.eq.s32.totalorder %s19, 0
      %p103 = por %p101, %p102
      %p104 = scmp.ne.s32.totalorder %s92, %s93
      %p105 = scmp.eq.s32.totalorder %s20, 1
      %p106 = por %p104, %p105
      %p108 = scmp.ne.s32.totalorder %s93, %s107
      %p109 = scmp.eq.s32.totalorder %s20, 0
      %p110 = por %p108, %p109
      %s112 = sadd.s32 %s111, 1
      %p115 = scmp.eq.s32.totalorder %s14, 1
      %p116 = scmp.ne.s32.totalorder %s111, %s113
      %p117 = scmp.eq.s32.totalorder %s14, 0
      %p118 = por %p116, %p117
      %p119 = scmp.ne.s32.totalorder %s111, %s113
      %p120 = scmp.eq.s32.totalorder %s19, 1
      %p121 = por %p119, %p120
      %p122 = scmp.ne.s32.totalorder %s113, %s114
      %p123 = scmp.eq.s32.totalorder %s19, 0
      %p124 = por %p122, %p123
      %p125 = scmp.ne.s32.totalorder %s113, %s114
      %p126 = scmp.eq.s32.totalorder %s20, 1
      %p127 = por %p125, %p126
      %p129 = scmp.ne.s32.totalorder %s114, %s128
      %p130 = scmp.eq.s32.totalorder %s20, 0
      %p131 = por %p129, %p130
      %s132 = ssub.s32 %s21, %s33
      %s133 = ssub.s32 %s22, %s29
      %s134 = sor.u32 %s132, %s133
      %p135 = scmp.eq.s32.totalorder %s134, 0
      %s137 = sadd.s32 %s136, 1
      %s138 = scalar_select %p135, %s136, %s137
      %p141 = pneg %p135
      %p142 = scmp.eq.s32.totalorder %s14, 1
      %p143 = por %p141, %p142
      %p144 = scmp.ne.s32.totalorder %s136, %s139
      %p145 = scmp.eq.s32.totalorder %s14, 0
      %p146 = por %p144, %p145
      %p147 = scmp.ne.s32.totalorder %s136, %s139
      %p148 = scmp.eq.s32.totalorder %s19, 1
      %p149 = por %p147, %p148
      %p150 = scmp.ne.s32.totalorder %s139, %s140
      %p151 = scmp.eq.s32.totalorder %s19, 0
      %p152 = por %p150, %p151
      %p153 = scmp.ne.s32.totalorder %s139, %s140
      %p154 = scmp.eq.s32.totalorder %s20, 1
      %p155 = por %p153, %p154
      %p157 = scmp.ne.s32.totalorder %s140, %s156
      %p158 = scmp.eq.s32.totalorder %s20, 0
      %p159 = por %p157, %p158
      %p160 = scmp.le.s32.totalorder 1, %s14
      %p161 = scmp.lt.s32.totalorder %s14, 3
      %p162 = pnand %p160, %p161
      %p163 = pneg %p162
      // Predicated region
      $region9: #{data_embedding_wo_pos.1} parent=5 // pred_check
        _
      $region10: #{data_embedding_wo_pos.1} parent=5 // pred_check_branch
        %165 = sbr.rel (%p162) target = $region12
      $region11: #{data_embedding_wo_pos.1} parent=5 // pred_region
        %s166 = ssub.s32 %s14, 1
        // Predicated region
        $region13: #{data_embedding_wo_pos.1} parent=11 // pred_check
          %p167 = pneg %p103
        $region14: #{data_embedding_wo_pos.1} parent=11 // pred_check_branch
          %169 = sbr.rel (%p167) target = $region16
        $region15: #{data_embedding_wo_pos.1} parent=11 // pred_region
          _
        $region16: #{data_embedding_wo_pos.1} parent=11 // pred_fallthru
          _
        // Predicated region
        $region17: #{data_embedding_wo_pos.1} parent=11 // pred_check
          %p170 = pneg %p124
        $region18: #{data_embedding_wo_pos.1} parent=11 // pred_check_branch
          %172 = sbr.rel (%p170) target = $region20
        $region19: #{data_embedding_wo_pos.1} parent=11 // pred_region
          %s174 = ssub.s32 8192, 8192
          %175 = vsyncadd [#allocation3], %s174
          %s176 = sshll.u32 [#allocation2], 4
          %s177 = int_to_ptr.vmem [resolvable:$true] %s176
          %182 = dma.hbm_to_vmem [thread:$0]  %s3, 8192, %s177, [#allocation3], 128, 128, 8
        $region20: #{data_embedding_wo_pos.1} parent=11 // pred_fallthru
          _
      $region12: #{data_embedding_wo_pos.1} parent=5 // pred_fallthru
        _
      %p183 = scmp.lt.s32.totalorder %s14, 2
      // Predicated region
      $region21: #{data_embedding_wo_pos.1} parent=5 // pred_check
        %p184 = pneg %p183
      $region22: #{data_embedding_wo_pos.1} parent=5 // pred_check_branch
        %186 = sbr.rel (%p184) target = $region24
      $region23: #{data_embedding_wo_pos.1} parent=5 // pred_region
        // Predicated region
        $region25: #{data_embedding_wo_pos.1} parent=23 // pred_check
          %p187 = pneg %p48
        $region26: #{data_embedding_wo_pos.1} parent=23 // pred_check_branch
          %189 = sbr.rel (%p187) target = $region28
        $region27: #{data_embedding_wo_pos.1} parent=23 // pred_region
          %p190 = scmp.lt.s32.totalorder %s21, 1
          %s191 = scalar_select %p190, %s21, 1
          %p192 = scmp.lt.s32.totalorder %s22, 0
          %s193 = scalar_select %p192, %s22, 0
          %s194 = sadd.s32 %s193, %s191
          %s195 = smul.addr %s194, 8
          %s196 = scalar_lea.vmem %s0, %s195
        $region28: #{data_embedding_wo_pos.1} parent=23 // pred_fallthru
          _
        // Predicated region
        $region29: #{data_embedding_wo_pos.1} parent=23 // pred_check
          %p197 = pneg %p76
        $region30: #{data_embedding_wo_pos.1} parent=23 // pred_check_branch
          %199 = sbr.rel (%p197) target = $region32
        $region31: #{data_embedding_wo_pos.1} parent=23 // pred_region
          %p200 = scmp.lt.s32.totalorder %s21, 1
          %s201 = scalar_select %p200, %s21, 1
          %p202 = scmp.lt.s32.totalorder %s22, 0
          %s203 = scalar_select %p202, %s22, 0
          %s204 = sadd.s32 %s203, %s201
          %s205 = smul.addr %s204, 8
          %s206 = scalar_lea.vmem %s1, %s205
        $region32: #{data_embedding_wo_pos.1} parent=23 // pred_fallthru
          _
      $region24: #{data_embedding_wo_pos.1} parent=5 // pred_fallthru
        _
      %p207 = scmp.le.s32.totalorder 1, %s14
      %p208 = scmp.lt.s32.totalorder %s14, 3
      %p209 = pnand %p207, %p208
      %p210 = pneg %p209
      // Predicated region
      $region33: #{data_embedding_wo_pos.1} parent=5 // pred_check
        _
      $region34: #{data_embedding_wo_pos.1} parent=5 // pred_check_branch
        %212 = sbr.rel (%p209) target = $region36
      $region35: #{data_embedding_wo_pos.1} parent=5 // pred_region
        %s213 = ssub.s32 %s14, 1
        // Predicated region
        $region37: #{data_embedding_wo_pos.1} parent=35 // pred_check
          %p214 = pneg %p124
        $region38: #{data_embedding_wo_pos.1} parent=35 // pred_check_branch
          %216 = sbr.rel (%p214) target = $region40
        $region39: #{data_embedding_wo_pos.1} parent=35 // pred_region
          %217 = dma.done [#allocation3], 8192
        $region40: #{data_embedding_wo_pos.1} parent=35 // pred_fallthru
          _
        %p218 = scmp.lt.s32.totalorder %s23, 1
        %s219 = scalar_select %p218, %s23, 1
        %p220 = scmp.lt.s32.totalorder %s24, 0
        %s221 = scalar_select %p220, %s24, 0
        %s222 = sadd.s32 %s221, %s219
        %s223 = smul.addr %s222, 8
        %s224 = scalar_lea.vmem %s0, %s223
        %p225 = pneg %p54
        %p226 = pneg %p51
        %p227 = scmp.lt.s32.totalorder %s23, 1
        %s228 = scalar_select %p227, %s23, 1
        %p229 = scmp.lt.s32.totalorder %s24, 0
        %s230 = scalar_select %p229, %s24, 0
        %s231 = sadd.s32 %s230, %s228
        %s232 = smul.addr %s231, 8
        %s233 = scalar_lea.vmem %s1, %s232
        %p234 = pneg %p82
        %p235 = pneg %p79
        %p236 = pneg %p103
        %p237 = pneg %p100
        %p238 = pneg %p124
        %p239 = pneg %p121
        %p240 = pneg %p152
        %p241 = pneg %p149
        %s242 = sand.u32 %s139, 1
        %s243 = scalar_lea.sflag [#allocation4], %s242
        %s244 = sand.u32 %s139, 1
        %s245 = smul.addr %s244, 8
        %s246 = scalar_lea.vmem [#allocation5], %s245
        %p247 = scmp.lt.s32.totalorder %s23, 1
        %s248 = scalar_select %p247, %s23, 1
        %p249 = scmp.lt.s32.totalorder %s24, 0
        %s250 = scalar_select %p249, %s24, 0
        %s251 = sadd.s32 %s250, %s248
        %s252 = smul.addr %s251, 8
        %s253 = scalar_lea.vmem %s0, %s252
        %p254 = scmp.lt.s32.totalorder %s23, 1
        %s255 = scalar_select %p254, %s23, 1
        %p256 = scmp.lt.s32.totalorder %s24, 0
        %s257 = scalar_select %p256, %s24, 0
        %s258 = sadd.s32 %s257, %s255
        %s259 = smul.addr %s258, 8
        %s260 = scalar_lea.vmem %s1, %s259
        %v261 = vld [vmem:[%s253] sm:$0xff]
        %v262 = vld [vmem:[%s2] sm:$0xff]
        %v263 = vld [vmem:[%s2 + $0x8] sm:$0xf]
        %v264 = vld [vmem:[%s260] sm:$0xff]
        %265 = vxpose.xlu0.b32.start [1/16] %v264, 128
        %266 = vxpose.xlu0.b32.cont [2/16] 0.0, 128
        %267 = vxpose.xlu0.b32.cont [3/16] 0.0, 128
        %268 = vxpose.xlu0.b32.cont [4/16] 0.0, 128
        %269 = vxpose.xlu0.b32.cont [5/16] 0.0, 128
        %270 = vxpose.xlu0.b32.cont [6/16] 0.0, 128
        %271 = vxpose.xlu0.b32.cont [7/16] 0.0, 128
        %272 = vxpose.xlu0.b32.cont [8/16] 0.0, 128
        %273 = vxpose.xlu0.b32.cont [9/16] 0.0, 128
        %274 = vxpose.xlu0.b32.cont [10/16] 0.0, 128
        %275 = vxpose.xlu0.b32.cont [11/16] 0.0, 128
        %276 = vxpose.xlu0.b32.cont [12/16] 0.0, 128
        %277 = vxpose.xlu0.b32.cont [13/16] 0.0, 128
        %278 = vxpose.xlu0.b32.cont [14/16] 0.0, 128
        %279 = vxpose.xlu0.b32.cont [15/16] 0.0, 128
        %280 = vxpose.xlu0.b32.end [16/16] 0.0, 128
        %v281 = vpop.trf.xlu0
        %v282 = vpop.trf.xlu0
        %v283 = vpop.trf.xlu0
        %v284 = vpop.trf.xlu0
        %v285 = vpop.trf.xlu0
        %v286 = vpop.trf.xlu0
        %v287 = vpop.trf.xlu0
        %v288 = vpop.trf.xlu0
        %v289 = vpop.trf.xlu0
        %v290 = vpop.trf.xlu0
        %v291 = vpop.trf.xlu0
        %v292 = vpop.trf.xlu0
        %v293 = vpop.trf.xlu0
        %v294 = vpop.trf.xlu0
        %v295 = vpop.trf.xlu0
        %v296 = vpop.trf.xlu0
        %v297 = vlaneseq
        %v298 = vand.u32 %v297, 127
        %v299 = vadd.s32 %v298, 128
        %v300 = vadd.s32 %v298, 256
        %v301 = vadd.s32 %v298, 384
        %v302 = vcvt.s32.f32 %v298
        %v303 = vcvt.s32.f32 %v299
        %v304 = vcvt.s32.f32 %v300
        %v305 = vcvt.s32.f32 %v301
        %307 = vset.pattern.permute.xlu0 0
        %308 = vperm.xlu0 %307, %v281
        %v309 = vpop.permute.xlu0 %308
        %vm311 = vcmp.eq.f32.partialorder %v302, %v309
        %vm312 = vcmp.eq.f32.partialorder %v303, %v309
        %vm313 = vcmp.eq.f32.partialorder %v304, %v309
        %vm314 = vcmp.eq.f32.partialorder %v305, %v309
        %315 = vset.pattern.permute.xlu0 1
        %316 = vperm.xlu0 %315, %v281
        %v317 = vpop.permute.xlu0 %316
        %vm319 = vcmp.eq.f32.partialorder %v302, %v317
        %vm320 = vcmp.eq.f32.partialorder %v303, %v317
        %vm321 = vcmp.eq.f32.partialorder %v304, %v317
        %vm322 = vcmp.eq.f32.partialorder %v305, %v317
        %vm323 = vmor %vm311, %vm319
        %vm324 = vmor %vm312, %vm320
        %vm325 = vmor %vm313, %vm321
        %vm326 = vmor %vm314, %vm322
        %327 = vset.pattern.permute.xlu0 2
        %328 = vperm.xlu0 %327, %v281
        %v329 = vpop.permute.xlu0 %328
        %vm331 = vcmp.eq.f32.partialorder %v302, %v329
        %vm332 = vcmp.eq.f32.partialorder %v303, %v329
        %vm333 = vcmp.eq.f32.partialorder %v304, %v329
        %vm334 = vcmp.eq.f32.partialorder %v305, %v329
        %vm335 = vmor %vm323, %vm331
        %vm336 = vmor %vm324, %vm332
        %vm337 = vmor %vm325, %vm333
        %vm338 = vmor %vm326, %vm334
        %339 = vset.pattern.permute.xlu0 3
        %340 = vperm.xlu0 %339, %v281
        %v341 = vpop.permute.xlu0 %340
        %vm343 = vcmp.eq.f32.partialorder %v302, %v341
        %vm344 = vcmp.eq.f32.partialorder %v303, %v341
        %vm345 = vcmp.eq.f32.partialorder %v304, %v341
        %vm346 = vcmp.eq.f32.partialorder %v305, %v341
        %vm347 = vmor %vm335, %vm343
        %vm348 = vmor %vm336, %vm344
        %vm349 = vmor %vm337, %vm345
        %vm350 = vmor %vm338, %vm346
        %v351 = vsel %vm347, 1.0, 0.0
        %v352 = vsel %vm348, 1.0, 0.0
        %v353 = vsel %vm349, 1.0, 0.0
        %v354 = vsel %vm350, 1.0, 0.0
        %v355 = vld [vmem:[#allocation2] sm:$0xff]
        %v356 = vld [vmem:[#allocation2 + $0x8] sm:$0xff]
        %v357 = vld [vmem:[#allocation2 + $0x10] sm:$0xff]
        %v358 = vld [vmem:[#allocation2 + $0x18] sm:$0xff]
        %v359 = vld [vmem:[#allocation2 + $0x20] sm:$0xff]
        %v360 = vld [vmem:[#allocation2 + $0x28] sm:$0xff]
        %v361 = vld [vmem:[#allocation2 + $0x30] sm:$0xff]
        %v362 = vld [vmem:[#allocation2 + $0x38] sm:$0xff]
        %v363 = vld [vmem:[#allocation2 + $0x40] sm:$0xff]
        %v364 = vld [vmem:[#allocation2 + $0x48] sm:$0xff]
        %v365 = vld [vmem:[#allocation2 + $0x50] sm:$0xff]
        %v366 = vld [vmem:[#allocation2 + $0x58] sm:$0xff]
        %v367 = vld [vmem:[#allocation2 + $0x60] sm:$0xff]
        %v368 = vld [vmem:[#allocation2 + $0x68] sm:$0xff]
        %v369 = vld [vmem:[#allocation2 + $0x70] sm:$0xff]
        %v370 = vld [vmem:[#allocation2 + $0x78] sm:$0xff]
        %v371 = vld [vmem:[#allocation2 + $0x80] sm:$0xff]
        %v372 = vld [vmem:[#allocation2 + $0x88] sm:$0xff]
        %v373 = vld [vmem:[#allocation2 + $0x90] sm:$0xff]
        %v374 = vld [vmem:[#allocation2 + $0x98] sm:$0xff]
        %v375 = vld [vmem:[#allocation2 + $0xa0] sm:$0xff]
        %v376 = vld [vmem:[#allocation2 + $0xa8] sm:$0xff]
        %v377 = vld [vmem:[#allocation2 + $0xb0] sm:$0xff]
        %v378 = vld [vmem:[#allocation2 + $0xb8] sm:$0xff]
        %v379 = vld [vmem:[#allocation2 + $0xc0] sm:$0xff]
        %v380 = vld [vmem:[#allocation2 + $0xc8] sm:$0xff]
        %v381 = vld [vmem:[#allocation2 + $0xd0] sm:$0xff]
        %v382 = vld [vmem:[#allocation2 + $0xd8] sm:$0xff]
        %v383 = vld [vmem:[#allocation2 + $0xe0] sm:$0xff]
        %v384 = vld [vmem:[#allocation2 + $0xe8] sm:$0xff]
        %v385 = vld [vmem:[#allocation2 + $0xf0] sm:$0xff]
        %v386 = vld [vmem:[#allocation2 + $0xf8] sm:$0xff]
        %v387 = vld [vmem:[#allocation2 + $0x100] sm:$0xff]
        %v388 = vld [vmem:[#allocation2 + $0x108] sm:$0xff]
        %v389 = vld [vmem:[#allocation2 + $0x110] sm:$0xff]
        %v390 = vld [vmem:[#allocation2 + $0x118] sm:$0xff]
        %v391 = vld [vmem:[#allocation2 + $0x120] sm:$0xff]
        %v392 = vld [vmem:[#allocation2 + $0x128] sm:$0xff]
        %v393 = vld [vmem:[#allocation2 + $0x130] sm:$0xff]
        %v394 = vld [vmem:[#allocation2 + $0x138] sm:$0xff]
        %v395 = vld [vmem:[#allocation2 + $0x140] sm:$0xff]
        %v396 = vld [vmem:[#allocation2 + $0x148] sm:$0xff]
        %v397 = vld [vmem:[#allocation2 + $0x150] sm:$0xff]
        %v398 = vld [vmem:[#allocation2 + $0x158] sm:$0xff]
        %v399 = vld [vmem:[#allocation2 + $0x160] sm:$0xff]
        %v400 = vld [vmem:[#allocation2 + $0x168] sm:$0xff]
        %v401 = vld [vmem:[#allocation2 + $0x170] sm:$0xff]
        %v402 = vld [vmem:[#allocation2 + $0x178] sm:$0xff]
        %v403 = vld [vmem:[#allocation2 + $0x180] sm:$0xff]
        %v404 = vld [vmem:[#allocation2 + $0x188] sm:$0xff]
        %v405 = vld [vmem:[#allocation2 + $0x190] sm:$0xff]
        %v406 = vld [vmem:[#allocation2 + $0x198] sm:$0xff]
        %v407 = vld [vmem:[#allocation2 + $0x1a0] sm:$0xff]
        %v408 = vld [vmem:[#allocation2 + $0x1a8] sm:$0xff]
        %v409 = vld [vmem:[#allocation2 + $0x1b0] sm:$0xff]
        %v410 = vld [vmem:[#allocation2 + $0x1b8] sm:$0xff]
        %v411 = vld [vmem:[#allocation2 + $0x1c0] sm:$0xff]
        %v412 = vld [vmem:[#allocation2 + $0x1c8] sm:$0xff]
        %v413 = vld [vmem:[#allocation2 + $0x1d0] sm:$0xff]
        %v414 = vld [vmem:[#allocation2 + $0x1d8] sm:$0xff]
        %v415 = vld [vmem:[#allocation2 + $0x1e0] sm:$0xff]
        %v416 = vld [vmem:[#allocation2 + $0x1e8] sm:$0xff]
        %v417 = vld [vmem:[#allocation2 + $0x1f0] sm:$0xff]
        %v418 = vld [vmem:[#allocation2 + $0x1f8] sm:$0xff]
        %419 = vmatprep.subr.mxu0 0.0
        %420 = vmatpush1.msra.mxu0 %v370
        %421 = vmatprep.subr.mxu0 0.0
        %422 = vmatpush1.msra.mxu0 %v369
        %423 = vmatprep.subr.mxu0 0.0
        %424 = vmatpush1.msra.mxu0 %v368
        %425 = vmatprep.subr.mxu0 0.0
        %426 = vmatpush1.msra.mxu0 %v367
        %427 = vmatprep.subr.mxu0 0.0
        %428 = vmatpush1.msra.mxu0 %v366
        %429 = vmatprep.subr.mxu0 0.0
        %430 = vmatpush1.msra.mxu0 %v365
        %431 = vmatprep.subr.mxu0 0.0
        %432 = vmatpush1.msra.mxu0 %v364
        %433 = vmatprep.subr.mxu0 0.0
        %434 = vmatpush1.msra.mxu0 %v363
        %435 = vmatprep.subr.mxu0 0.0
        %436 = vmatpush1.msra.mxu0 %v362
        %437 = vmatprep.subr.mxu0 0.0
        %438 = vmatpush1.msra.mxu0 %v361
        %439 = vmatprep.subr.mxu0 0.0
        %440 = vmatpush1.msra.mxu0 %v360
        %441 = vmatprep.subr.mxu0 0.0
        %442 = vmatpush1.msra.mxu0 %v359
        %443 = vmatprep.subr.mxu0 0.0
        %444 = vmatpush1.msra.mxu0 %v358
        %445 = vmatprep.subr.mxu0 0.0
        %446 = vmatpush1.msra.mxu0 %v357
        %447 = vmatprep.subr.mxu0 0.0
        %448 = vmatpush1.msra.mxu0 %v356
        %449 = vmatprep.subr.mxu0 0.0
        %450 = vmatpush1.msra.mxu0 %v355
        %451 = vmatprep.subr.mxu0 0.0
        %452 = vmatpush2.msra.mxu0 %v386
        %453 = vmatprep.subr.mxu0 0.0
        %454 = vmatpush2.msra.mxu0 %v385
        %455 = vmatprep.subr.mxu0 0.0
        %456 = vmatpush2.msra.mxu0 %v384
        %457 = vmatprep.subr.mxu0 0.0
        %458 = vmatpush2.msra.mxu0 %v383
        %459 = vmatprep.subr.mxu0 0.0
        %460 = vmatpush2.msra.mxu0 %v382
        %461 = vmatprep.subr.mxu0 0.0
        %462 = vmatpush2.msra.mxu0 %v381
        %463 = vmatprep.subr.mxu0 0.0
        %464 = vmatpush2.msra.mxu0 %v380
        %465 = vmatprep.subr.mxu0 0.0
        %466 = vmatpush2.msra.mxu0 %v379
        %467 = vmatprep.subr.mxu0 0.0
        %468 = vmatpush2.msra.mxu0 %v378
        %469 = vmatprep.subr.mxu0 0.0
        %470 = vmatpush2.msra.mxu0 %v377
        %471 = vmatprep.subr.mxu0 0.0
        %472 = vmatpush2.msra.mxu0 %v376
        %473 = vmatprep.subr.mxu0 0.0
        %474 = vmatpush2.msra.mxu0 %v375
        %475 = vmatprep.subr.mxu0 0.0
        %476 = vmatpush2.msra.mxu0 %v374
        %477 = vmatprep.subr.mxu0 0.0
        %478 = vmatpush2.msra.mxu0 %v373
        %479 = vmatprep.subr.mxu0 0.0
        %480 = vmatpush2.msra.mxu0 %v372
        %481 = vmatprep.subr.mxu0 0.0
        %482 = vmatpush2.msra.mxu0 %v371
        %483 = vmatprep.mubr.f32.mxu0 %v352
        %484 = vmatmul.mubr.f32.gmra.mxu0 %v351
        %v485 = vpop.f32.mrf.mxu0
        %v486 = vadd.f32 0.0, %v485
        %v487 = vpop.f32.mrf.mxu0
        %488 = vdwg.mxu0
        %489 = vmatprep.subr.mxu0 0.0
        %490 = vmatpush1.msra.mxu0 %v402
        %491 = vmatprep.subr.mxu0 0.0
        %492 = vmatpush1.msra.mxu0 %v401
        %493 = vmatprep.subr.mxu0 0.0
        %494 = vmatpush1.msra.mxu0 %v400
        %495 = vmatprep.subr.mxu0 0.0
        %496 = vmatpush1.msra.mxu0 %v399
        %497 = vmatprep.subr.mxu0 0.0
        %498 = vmatpush1.msra.mxu0 %v398
        %499 = vmatprep.subr.mxu0 0.0
        %500 = vmatpush1.msra.mxu0 %v397
        %501 = vmatprep.subr.mxu0 0.0
        %502 = vmatpush1.msra.mxu0 %v396
        %503 = vmatprep.subr.mxu0 0.0
        %504 = vmatpush1.msra.mxu0 %v395
        %505 = vmatprep.subr.mxu0 0.0
        %506 = vmatpush1.msra.mxu0 %v394
        %507 = vmatprep.subr.mxu0 0.0
        %508 = vmatpush1.msra.mxu0 %v393
        %509 = vmatprep.subr.mxu0 0.0
        %510 = vmatpush1.msra.mxu0 %v392
        %511 = vmatprep.subr.mxu0 0.0
        %512 = vmatpush1.msra.mxu0 %v391
        %513 = vmatprep.subr.mxu0 0.0
        %514 = vmatpush1.msra.mxu0 %v390
        %515 = vmatprep.subr.mxu0 0.0
        %516 = vmatpush1.msra.mxu0 %v389
        %517 = vmatprep.subr.mxu0 0.0
        %518 = vmatpush1.msra.mxu0 %v388
        %519 = vmatprep.subr.mxu0 0.0
        %520 = vmatpush1.msra.mxu0 %v387
        %521 = vmatprep.subr.mxu0 0.0
        %522 = vmatpush2.msra.mxu0 %v418
        %523 = vmatprep.subr.mxu0 0.0
        %524 = vmatpush2.msra.mxu0 %v417
        %525 = vmatprep.subr.mxu0 0.0
        %526 = vmatpush2.msra.mxu0 %v416
        %527 = vmatprep.subr.mxu0 0.0
        %528 = vmatpush2.msra.mxu0 %v415
        %529 = vmatprep.subr.mxu0 0.0
        %530 = vmatpush2.msra.mxu0 %v414
        %531 = vmatprep.subr.mxu0 0.0
        %532 = vmatpush2.msra.mxu0 %v413
        %533 = vmatprep.subr.mxu0 0.0
        %534 = vmatpush2.msra.mxu0 %v412
        %535 = vmatprep.subr.mxu0 0.0
        %536 = vmatpush2.msra.mxu0 %v411
        %537 = vmatprep.subr.mxu0 0.0
        %538 = vmatpush2.msra.mxu0 %v410
        %539 = vmatprep.subr.mxu0 0.0
        %540 = vmatpush2.msra.mxu0 %v409
        %541 = vmatprep.subr.mxu0 0.0
        %542 = vmatpush2.msra.mxu0 %v408
        %543 = vmatprep.subr.mxu0 0.0
        %544 = vmatpush2.msra.mxu0 %v407
        %545 = vmatprep.subr.mxu0 0.0
        %546 = vmatpush2.msra.mxu0 %v406
        %547 = vmatprep.subr.mxu0 0.0
        %548 = vmatpush2.msra.mxu0 %v405
        %549 = vmatprep.subr.mxu0 0.0
        %550 = vmatpush2.msra.mxu0 %v404
        %551 = vmatprep.subr.mxu0 0.0
        %552 = vmatpush2.msra.mxu0 %v403
        %553 = vmatprep.mubr.f32.mxu0 %v354
        %554 = vmatmul.mubr.f32.gmra.mxu0 %v353
        %v555 = vpop.f32.mrf.mxu0
        %v556 = vadd.f32 %v486, %v555
        %v557 = vpop.f32.mrf.mxu0
        %558 = vdwg.mxu0
        %vm559 = vcmask 97280
        %v561 = vsel %vm559, %v261, 0
        %vm563 = vcmask 1043456
        %v565 = vsel %vm563, %v263, 0
        %567 = vmatprep.subr.mxu0 0.0
        %568 = vmatpush1.msra.mxu0 0.0
        %569 = vmatprep.subr.mxu0 0.0
        %570 = vmatpush1.msra.mxu0 0.0
        %571 = vmatprep.subr.mxu0 0.0
        %572 = vmatpush1.msra.mxu0 0.0
        %573 = vmatprep.subr.mxu0 0.0
        %574 = vmatpush1.msra.mxu0 0.0
        %575 = vmatprep.subr.mxu0 0.0
        %576 = vmatpush1.msra.mxu0 0.0
        %577 = vmatprep.subr.mxu0 0.0
        %578 = vmatpush1.msra.mxu0 0.0
        %579 = vmatprep.subr.mxu0 0.0
        %580 = vmatpush1.msra.mxu0 0.0
        %581 = vmatprep.subr.mxu0 0.0
        %582 = vmatpush1.msra.mxu0 0.0
        %583 = vmatprep.subr.mxu0 0.0
        %584 = vmatpush1.msra.mxu0 0.0
        %585 = vmatprep.subr.mxu0 0.0
        %586 = vmatpush1.msra.mxu0 0.0
        %587 = vmatprep.subr.mxu0 0.0
        %588 = vmatpush1.msra.mxu0 0.0
        %589 = vmatprep.subr.mxu0 0.0
        %590 = vmatpush1.msra.mxu0 0.0
        %591 = vmatprep.subr.mxu0 0.0
        %592 = vmatpush1.msra.mxu0 0.0
        %593 = vmatprep.subr.mxu0 0.0
        %594 = vmatpush1.msra.mxu0 0.0
        %595 = vmatprep.subr.mxu0 0.0
        %596 = vmatpush1.msra.mxu0 %v565
        %597 = vmatprep.subr.mxu0 0.0
        %598 = vmatpush1.msra.mxu0 %v262
        %599 = vmatprep.subr.mxu0 0.0
        %600 = vmatpush2.msra.mxu0 0.0
        %601 = vmatprep.subr.mxu0 0.0
        %602 = vmatpush2.msra.mxu0 0.0
        %603 = vmatprep.subr.mxu0 0.0
        %604 = vmatpush2.msra.mxu0 0.0
        %605 = vmatprep.subr.mxu0 0.0
        %606 = vmatpush2.msra.mxu0 0.0
        %607 = vmatprep.subr.mxu0 0.0
        %608 = vmatpush2.msra.mxu0 0.0
        %609 = vmatprep.subr.mxu0 0.0
        %610 = vmatpush2.msra.mxu0 0.0
        %611 = vmatprep.subr.mxu0 0.0
        %612 = vmatpush2.msra.mxu0 0.0
        %613 = vmatprep.subr.mxu0 0.0
        %614 = vmatpush2.msra.mxu0 0.0
        %615 = vmatprep.subr.mxu0 0.0
        %616 = vmatpush2.msra.mxu0 0.0
        %617 = vmatprep.subr.mxu0 0.0
        %618 = vmatpush2.msra.mxu0 0.0
        %619 = vmatprep.subr.mxu0 0.0
        %620 = vmatpush2.msra.mxu0 0.0
        %621 = vmatprep.subr.mxu0 0.0
        %622 = vmatpush2.msra.mxu0 0.0
        %623 = vmatprep.subr.mxu0 0.0
        %624 = vmatpush2.msra.mxu0 0.0
        %625 = vmatprep.subr.mxu0 0.0
        %626 = vmatpush2.msra.mxu0 0.0
        %627 = vmatprep.subr.mxu0 0.0
        %628 = vmatpush2.msra.mxu0 0.0
        %629 = vmatprep.subr.mxu0 0.0
        %630 = vmatpush2.msra.mxu0 0.0
        %631 = vmatprep.mubr.f32.mxu0 0.0
        %632 = vmatmul.mubr.f32.gmra.mxu0 %v561
        %v633 = vpop.f32.mrf.mxu0
        %v634 = vadd.f32 %v556, %v633
        %v635 = vpop.f32.mrf.mxu0
        %636 = vdwg.mxu0
        %vm637 = vcmask 261120
        %638 = vst.msk [vmem:[%s246] sm:$0xff] %vm637, %v634
        %s639 = sand.u32 %s139, 1
        %s640 = scalar_lea.sflag [#allocation4], %s639
        %s641 = sand.u32 %s139, 1
        %s642 = smul.addr %s641, 8
        %s643 = scalar_lea.vmem [#allocation5], %s642
        // Predicated region
        $region41: #{data_embedding_wo_pos.1} parent=35 // pred_check
          %p644 = pneg %p149
        $region42: #{data_embedding_wo_pos.1} parent=35 // pred_check_branch
          %646 = sbr.rel (%p644) target = $region44
        $region43: #{data_embedding_wo_pos.1} parent=35 // pred_region
          %s648 = ssub.s32 128, 128
          %649 = vsyncadd %s640, %s648
          %s650 = sadd.s32 %s24, %s23
          %s651 = smul.addr %s650, 128
          %s652 = scalar_lea.hbm %s4, %s651
          %s654 = sshll.u32 %s643, 4
          %s655 = int_to_ptr.vmem [resolvable:$true] %s654
          %657 = dma.vmem_to_hbm [thread:$0]  %s655, 128, %s652, %s640
        $region44: #{data_embedding_wo_pos.1} parent=35 // pred_fallthru
          _
      $region36: #{data_embedding_wo_pos.1} parent=5 // pred_fallthru
        _
      %p658 = scmp.le.s32.totalorder 2, %s14
      // Predicated region
      $region45: #{data_embedding_wo_pos.1} parent=5 // pred_check
        %p659 = pneg %p658
      $region46: #{data_embedding_wo_pos.1} parent=5 // pred_check_branch
        %661 = sbr.rel (%p659) target = $region48
      $region47: #{data_embedding_wo_pos.1} parent=5 // pred_region
        %s662 = ssub.s32 %s14, 2
        // Predicated region
        $region49: #{data_embedding_wo_pos.1} parent=47 // pred_check
          %p663 = pneg %p155
        $region50: #{data_embedding_wo_pos.1} parent=47 // pred_check_branch
          %665 = sbr.rel (%p663) target = $region52
        $region51: #{data_embedding_wo_pos.1} parent=47 // pred_region
          %s666 = sand.u32 %s140, 1
          %s667 = scalar_lea.sflag [#allocation4], %s666
          %s668 = sand.u32 %s140, 1
          %s669 = smul.addr %s668, 8
          %s670 = scalar_lea.vmem [#allocation5], %s669
          %671 = dma.done %s667, 128
        $region52: #{data_embedding_wo_pos.1} parent=47 // pred_fallthru
          _
      $region48: #{data_embedding_wo_pos.1} parent=5 // pred_fallthru
        _
    $region6: #{data_embedding_wo_pos.1} parent=1 // loop_footer
      %s18 = sadd.s32 1, %s14
    $region7: #{data_embedding_wo_pos.1} parent=1 // loop_footer_branch
      %13 = sbr.rel target = $region3
    $region8: #{data_embedding_wo_pos.1} parent=1 // loop_exit
      _
    %672 = vsyncpa [#allocation3], 1
    %s673 = scalar_lea.sflag [#allocation3], 1
    %674 = vsyncpa %s673, 1
    %675 = vsyncpa [#allocation4], 1
    %s676 = scalar_lea.sflag [#allocation4], 1
    %677 = vsyncpa %s676, 1

</llo_original>
